<compile_context>
chip_gen: v6e
topology: v6e:2x2x1
jax: 0.10.0
libtpu: 0.0.40
codegen_flags: <defaults>
</compile_context>

<pallas_src>
import math
import functools

import jax
import jax.numpy as jnp
from jax import lax
from jax.experimental import pallas as pl
from jax.experimental.pallas import tpu as pltpu


_VMEM_HEADROOM = 8 * 2**20  # physical-VMEM headroom we never request


def _layer_norm(x, gamma, beta, eps):
    mu = jnp.mean(x, axis=-1, keepdims=True)
    var = jnp.mean((x - mu) ** 2, axis=-1, keepdims=True)
    return (x - mu) * lax.rsqrt(var + eps) * gamma + beta


def _gelu(x, approx_tanh):
    if approx_tanh:
        # tanh routes to the EUP (separate VLIW slot) — useful on v5e where the
        # exact-erf polynomial is VALU-heavy.  Off by default (nn.GELU parity).
        c = math.sqrt(2.0 / math.pi)
        return 0.5 * x * (1.0 + jnp.tanh(c * (x + 0.044715 * x * x * x)))
    return 0.5 * x * (1.0 + lax.erf(x * (1.0 / math.sqrt(2.0))))


# ----------------------------------------------------------------------------
# Kernels
# ----------------------------------------------------------------------------
def _kv_proj_kernel(x_ref, g1_ref, be1_ref, wkv_ref, bkv_ref, kv_ref, *, eps):
    """LayerNorm1 + K/V projection for one (tile, D) slab; written once per token."""
    x = x_ref[0].astype(jnp.float32)                                  # (T, D)
    xn = _layer_norm(x, g1_ref[0], be1_ref[0], eps)
    kv = jnp.dot(xn.astype(jnp.bfloat16), wkv_ref[...],
                 preferred_element_type=jnp.float32) + bkv_ref[0]     # (T, 2D)
    kv_ref[0] = kv.astype(kv_ref.dtype)                               # bf16


def _block_kernel(xq_ref, kv_ref,
                  g1_ref, be1_ref, wq_ref, bq_ref, wo_ref, bo_ref,
                  g2_ref, be2_ref, w1_ref, b1_ref, w2_ref, b2_ref,
                  o_ref, *, num_heads, eps, approx_gelu):
    TS, D = xq_ref.shape[1], xq_ref.shape[2]
    hd = D // num_heads
    bf16 = jnp.bfloat16
    f32 = jnp.float32

    x_q = xq_ref[0].astype(f32)                                       # (TS, D)

    # ---- LayerNorm1 + Q projection (query tile only; K/V precomputed) ----
    xn_q = _layer_norm(x_q, g1_ref[0], be1_ref[0], eps)
    q = jnp.dot(xn_q.astype(bf16), wq_ref[...],
                preferred_element_type=f32) + bq_ref[0]               # (TS, D)
    q = q * (1.0 / math.sqrt(hd))

    # ---- multi-head attention: per-head 2D matmuls on static column slices.
    # Head concat + out-projection fused as sum_h ctx_h @ Wo[h*hd:(h+1)*hd, :]
    # -> no transposes, no concat, no relayouts.
    attn = jnp.zeros((TS, D), f32)
    for h in range(num_heads):
        lo = h * hd
        q_h = q[:, lo:lo + hd].astype(bf16)                           # (TS, hd)
        k_h = kv_ref[0, :, lo:lo + hd]                                # (S, hd) bf16
        v_h = kv_ref[0, :, D + lo:D + lo + hd]                        # (S, hd) bf16

        # s = q_h @ k_h^T  (rhs-transposed contraction, native on the MXU)
        s = lax.dot_general(q_h, k_h, (((1,), (1,)), ((), ())),
                            preferred_element_type=f32)               # (TS, S)
        s = s - jnp.max(s, axis=-1, keepdims=True)
        p = jnp.exp(s)
        p = p * pl.reciprocal(jnp.sum(p, axis=-1, keepdims=True), approx=True)

        ctx_h = jnp.dot(p.astype(bf16), v_h,
                        preferred_element_type=f32)                   # (TS, hd)
        attn = attn + jnp.dot(ctx_h.astype(bf16), wo_ref[lo:lo + hd, :],
                              preferred_element_type=f32)             # (TS, D)
    attn = attn + bo_ref[0]

    x1 = x_q + attn                                                   # residual 1

    # ---- LayerNorm2 + MLP (Linear -> GELU -> Linear) ----
    xn2 = _layer_norm(x1, g2_ref[0], be2_ref[0], eps)
    hmid = jnp.dot(xn2.astype(bf16), w1_ref[...],
                   preferred_element_type=f32) + b1_ref[0]            # (TS, H)
    hmid = _gelu(hmid, approx_gelu)
    mlp = jnp.dot(hmid.astype(bf16), w2_ref[...],
                  preferred_element_type=f32) + b2_ref[0]             # (TS, D)

    o_ref[0] = (x1 + mlp).astype(o_ref.dtype)                         # residual 2


# ----------------------------------------------------------------------------
# Host-side plumbing
# ----------------------------------------------------------------------------
def _prep_params(params):
    """Split/transpose weights once on the host; matmul weights cast to bf16."""
    wqkv_t = params["wqkv"].T                                         # (D, 3D)
    D = wqkv_t.shape[0]
    bqkv = params["bqkv"]
    f32, bf16 = jnp.float32, jnp.bfloat16
    return {
        "g1": params["g1"].astype(f32), "be1": params["be1"].astype(f32),
        "wq_t": wqkv_t[:, :D].astype(bf16), "bq": bqkv[:, :D].astype(f32),
        "wkv_t": wqkv_t[:, D:].astype(bf16), "bkv": bqkv[:, D:].astype(f32),
        "wo_t": params["wo"].T.astype(bf16), "bo": params["bo"].astype(f32),
        "g2": params["g2"].astype(f32), "be2": params["be2"].astype(f32),
        "w1_t": params["w1"].T.astype(bf16), "b1": params["b1"].astype(f32),
        "w2_t": params["w2"].T.astype(bf16), "b2": params["b2"].astype(f32),
    }


def _vmem_cap_bytes():
    """Per-generation scoped-VMEM ceiling (physical minus headroom)."""
    cap = 64 * 2**20  # conservative default: v7x physical VMEM
    try:
        info = pltpu.get_tpu_info()
        cap = int(getattr(info, "vmem_capacity_bytes", cap))
    except Exception:
        pass
    return max(cap - _VMEM_HEADROOM, 16 * 2**20)


def _estimate_kv_vmem(TS, D):
    w = D * 2 * D * 2 + (3 * D + 2 * D) * 4                    # Wkv bf16 + vectors
    io = 2 * TS * D * 4 + 2 * TS * 2 * D * 2                   # x in / kv out (dbl-buffered)
    inter = (2 * TS * D + 2 * TS * 2 * D) * 4                  # f32 intermediates
    return w + io + inter


def _estimate_main_vmem(TS, S, D, H, num_heads):
    hd = D // num_heads
    w = 2 * D * D * 2 + 2 * D * H * 2 + (8 * D + 2 * H) * 4    # bf16 weights + f32 vectors
    io = 2 * TS * D * 4 + 2 * TS * D * 4                       # x tile + out tile (dbl-buffered)
    kvb = 2 * S * 2 * D * 2                                    # K/V block (dbl-buffered bf16)
    inter = (8 * TS * D + 2 * TS * S + 2 * TS * H + 2 * TS * hd) * 4
    return w + io + kvb + inter


def _vmem_limit(est, cap):
    return int(min(cap, max(int(est * 1.25), 32 * 2**20)))


def _pick_seq_tile(S, D, H, num_heads, cap):
    """Prefer large tiles (256/128) so the MXU M dimension stays filled."""
    cands = []
    if S <= 256:
        cands.append(S)
    cands += [c for c in (256, 128, 64, 32, 16, 8) if c < S and S % c == 0]
    for ts in cands:
        if _estimate_main_vmem(ts, S, D, H, num_heads) * 1.25 <= cap:
            return ts
    return cands[-1] if cands else S


def _const_spec():
    # Grid-constant operand: full array resident in VMEM, single copy,
    # not part of the double-buffered pipeline.
    return pl.BlockSpec(memory_space=pltpu.MemorySpace.VMEM)


def _kv_projection(x, p, *, seq_tile, eps, vmem_cap):
    B, S, D = x.shape
    limit = _vmem_limit(_estimate_kv_vmem(seq_tile, D), vmem_cap)
    call = pl.pallas_call(
        functools.partial(_kv_proj_kernel, eps=eps),
        out_shape=jax.ShapeDtypeStruct((B, S, 2 * D), jnp.bfloat16),
        grid_spec=pltpu.PrefetchScalarGridSpec(
            num_scalar_prefetch=0,
            grid=(B, S // seq_tile),
            in_specs=[
                pl.BlockSpec((1, seq_tile, D), lambda b, s: (b, s, 0)),  # x
                _const_spec(), _const_spec(),                            # ln1 gamma/beta
                _const_spec(), _const_spec(),                            # Wkv^T, bkv
            ],
            out_specs=pl.BlockSpec((1, seq_tile, 2 * D), lambda b, s: (b, s, 0)),
        ),
        compiler_params=pltpu.CompilerParams(
            dimension_semantics=("parallel", "parallel"),
            vmem_limit_bytes=limit,
        ),
    )
    return call(x, p["g1"], p["be1"], p["wkv_t"], p["bkv"])


def _attention_mlp(x, kv, p, *, seq_tile, num_heads, eps, approx_gelu, vmem_cap):
    B, S, D = x.shape
    H = p["w1_t"].shape[1]
    limit = _vmem_limit(_estimate_main_vmem(seq_tile, S, D, H, num_heads), vmem_cap)
    kernel = functools.partial(_block_kernel, num_heads=num_heads, eps=eps,
                               approx_gelu=approx_gelu)
    call = pl.pallas_call(
        kernel,
        out_shape=jax.ShapeDtypeStruct((B, S, D), x.dtype),
        grid_spec=pltpu.PrefetchScalarGridSpec(
            num_scalar_prefetch=0,
            grid=(B, S // seq_tile),
            in_specs=[
                pl.BlockSpec((1, seq_tile, D), lambda b, s: (b, s, 0)),  # x query tile
                # Precomputed K/V for the whole sequence (bf16); block index
                # changes only with b, so it is fetched once per batch element.
                pl.BlockSpec((1, S, 2 * D), lambda b, s: (b, 0, 0)),
                _const_spec(), _const_spec(),            # ln1 gamma/beta
                _const_spec(), _const_spec(),            # Wq^T, bq
                _const_spec(), _const_spec(),            # Wo^T, bo
                _const_spec(), _const_spec(),            # ln2 gamma/beta
                _const_spec(), _const_spec(),            # W1^T, b1
                _const_spec(), _const_spec(),            # W2^T, b2
            ],
            out_specs=pl.BlockSpec((1, seq_tile, D), lambda b, s: (b, s, 0)),
        ),
        compiler_params=pltpu.CompilerParams(
            dimension_semantics=("parallel", "parallel"),
            vmem_limit_bytes=limit,
        ),
    )
    return call(x, kv,
                p["g1"], p["be1"], p["wq_t"], p["bq"], p["wo_t"], p["bo"],
                p["g2"], p["be2"], p["w1_t"], p["b1"], p["w2_t"], p["b2"])


def transformer_block(x, params, *, num_heads=4, eps=1e-5, seq_tile=None,
                      approx_gelu=False):
    """x: (B, S, D) float32. params: PyTorch-layout weights (see init_params)."""
    B, S, D = x.shape
    assert D % num_heads == 0
    H = params["w1"].shape[0]
    cap = _vmem_cap_bytes()

    TS = _pick_seq_tile(S, D, H, num_heads, cap) if seq_tile is None else seq_tile
    assert S % TS == 0 and (TS % 8 == 0 or TS == S)

    p = _prep_params(params)
    kv = _kv_projection(x, p, seq_tile=TS, eps=eps, vmem_cap=cap)
    return _attention_mlp(x, kv, p, seq_tile=TS, num_heads=num_heads, eps=eps,
                          approx_gelu=approx_gelu, vmem_cap=cap)


# ----------------------------------------------------------------------------
# Pure-JAX reference + PyTorch-equivalent init
# ----------------------------------------------------------------------------
def transformer_block_reference(x, params, *, num_heads=4, eps=1e-5):
    hp = jax.lax.Precision.HIGHEST
    B, S, D = x.shape
    hd = D // num_heads

    def ln(v, g, b):
        mu = jnp.mean(v, -1, keepdims=True)
        var = jnp.mean((v - mu) ** 2, -1, keepdims=True)
        return (v - mu) * lax.rsqrt(var + eps) * g + b

    xn = ln(x, params["g1"][0], params["be1"][0])
    qkv = jnp.einsum("bsd,ed->bse", xn, params["wqkv"], precision=hp) + params["bqkv"][0]
    q, k, v = qkv[..., :D], qkv[..., D:2 * D], qkv[..., 2 * D:]

    def split(t):
        return jnp.transpose(t.reshape(B, S, num_heads, hd), (0, 2, 1, 3))

    qh = split(q) * (1.0 / math.sqrt(hd))
    kh, vh = split(k), split(v)
    s = jnp.einsum("bhqd,bhkd->bhqk", qh, kh, precision=hp)
    p = jax.nn.softmax(s, axis=-1)
    ctx = jnp.einsum("bhqk,bhkd->bhqd", p, vh, precision=hp)
    ctx = jnp.transpose(ctx, (0, 2, 1, 3)).reshape(B, S, D)
    attn = jnp.einsum("bsd,ed->bse", ctx, params["wo"], precision=hp) + params["bo"][0]
    x = x + attn

    xn2 = ln(x, params["g2"][0], params["be2"][0])
    h = jnp.einsum("bsd,hd->bsh", xn2, params["w1"], precision=hp) + params["b1"][0]
    h = 0.5 * h * (1.0 + lax.erf(h / math.sqrt(2.0)))
    mlp = jnp.einsum("bsh,dh->bsd", h, params["w2"], precision=hp) + params["b2"][0]
    return x + mlp


def init_params(key, dim, num_heads=4, mlp_ratio=4.0):
    H = int(dim * mlp_ratio)
    ks = jax.random.split(key, 6)
    f32 = jnp.float32

    def u(k, shape, fan_in):
        bound = 1.0 / math.sqrt(fan_in)
        return jax.random.uniform(k, shape, f32, -bound, bound)

    return {
        "g1": jnp.ones((1, dim), f32), "be1": jnp.zeros((1, dim), f32),
        "wqkv": u(ks[0], (3 * dim, dim), dim), "bqkv": jnp.zeros((1, 3 * dim), f32),
        "wo": u(ks[1], (dim, dim), dim), "bo": jnp.zeros((1, dim), f32),
        "g2": jnp.ones((1, dim), f32), "be2": jnp.zeros((1, dim), f32),
        "w1": u(ks[2], (H, dim), dim), "b1": u(ks[3], (1, H), dim),
        "w2": u(ks[4], (dim, H), H), "b2": u(ks[5], (1, dim), H),
    }


if __name__ == "__main__":
    # Small but lane-dense demo shapes: D multiple of 128, S multiple of 8.
    # (hd = D/num_heads = 32 underfills the MXU contraction; real configs should
    #  use hd >= 128, e.g. 8 heads at D = 1024.)
    B, S, D = 2, 16, 128
    num_heads = 4

    key = jax.random.PRNGKey(0)
    kx, kp = jax.random.split(key)
    x = jax.random.normal(kx, (B, S, D), jnp.float32)
    params = init_params(kp, D, num_heads=num_heads, mlp_ratio=4.0)

    out = transformer_block(x, params, num_heads=num_heads)
    out = jax.block_until_ready(out)
    assert out.shape == (B, S, D)

    ref = transformer_block_reference(x, params, num_heads=num_heads)
    max_err = float(jnp.max(jnp.abs(out - ref)))
    assert jnp.allclose(out, ref, atol=5e-2, rtol=5e-2), max_err

    print("KERNEL_OK")
</pallas_src>

<mosaic_0001>
module attributes {stable_mosaic.version = 11 : i64} {
  func.func @_kv_proj_kernel(%arg0: i32, %arg1: i32, %arg2: memref<1x16x128xf32, #tpu.memory_space<vmem>>, %arg3: memref<1x128xf32, #tpu.memory_space<vmem>>, %arg4: memref<1x128xf32, #tpu.memory_space<vmem>>, %arg5: memref<128x256xbf16, #tpu.memory_space<vmem>>, %arg6: memref<1x256xf32, #tpu.memory_space<vmem>>, %arg7: memref<1x16x256xbf16, #tpu.memory_space<vmem>>) attributes {dimension_semantics = [#tpu.dimension_semantics<parallel>, #tpu.dimension_semantics<parallel>], iteration_bounds = array<i64: 2, 1>, scalar_prefetch = 0 : i64, scratch_operands = 0 : i64, tpu.core_type = #tpu.core_type<tc>, window_params = [{transform_indices = @transform_0, window_bounds = array<i64: 1, 16, 128>}, {pipeline_mode = #tpu.pipeline_mode<synchronous>, transform_indices = @transform_1, window_bounds = array<i64: 1, 128>}, {pipeline_mode = #tpu.pipeline_mode<synchronous>, transform_indices = @transform_2, window_bounds = array<i64: 1, 128>}, {pipeline_mode = #tpu.pipeline_mode<synchronous>, transform_indices = @transform_3, window_bounds = array<i64: 128, 256>}, {pipeline_mode = #tpu.pipeline_mode<synchronous>, transform_indices = @transform_4, window_bounds = array<i64: 1, 256>}, {transform_indices = @transform_5, window_bounds = array<i64: 1, 16, 256>}]} {
    %c0 = arith.constant 0 : index
    %c0_0 = arith.constant 0 : index
    %c0_1 = arith.constant 0 : index
    %0 = vector.load %arg2[%c0, %c0_0, %c0_1] : memref<1x16x128xf32, #tpu.memory_space<vmem>>, vector<1x16x128xf32>
    %1 = vector.shape_cast %0 : vector<1x16x128xf32> to vector<16x128xf32>
    %c0_2 = arith.constant 0 : index
    %c0_3 = arith.constant 0 : index
    %2 = vector.load %arg3[%c0_2, %c0_3] : memref<1x128xf32, #tpu.memory_space<vmem>>, vector<1x128xf32>
    %3 = vector.shape_cast %2 : vector<1x128xf32> to vector<128xf32>
    %c0_4 = arith.constant 0 : index
    %c0_5 = arith.constant 0 : index
    %4 = vector.load %arg4[%c0_4, %c0_5] : memref<1x128xf32, #tpu.memory_space<vmem>>, vector<1x128xf32>
    %5 = vector.shape_cast %4 : vector<1x128xf32> to vector<128xf32>
    %cst = arith.constant dense<0.000000e+00> : vector<16xf32>
    %6 = vector.multi_reduction <add>, %1, %cst [1] : vector<16x128xf32> to vector<16xf32>
    %7 = vector.shape_cast %6 : vector<16xf32> to vector<16x1xf32>
    %cst_6 = arith.constant 1.280000e+02 : f32
    %8 = vector.broadcast %cst_6 : f32 to vector<16x1xf32>
    %9 = arith.divf %7, %8 : vector<16x1xf32>
    %10 = vector.broadcast %9 : vector<16x1xf32> to vector<16x128xf32>
    %11 = arith.subf %1, %10 : vector<16x128xf32>
    %12 = arith.mulf %11, %11 : vector<16x128xf32>
    %cst_7 = arith.constant dense<0.000000e+00> : vector<16xf32>
    %13 = vector.multi_reduction <add>, %12, %cst_7 [1] : vector<16x128xf32> to vector<16xf32>
    %14 = vector.shape_cast %13 : vector<16xf32> to vector<16x1xf32>
    %cst_8 = arith.constant 1.280000e+02 : f32
    %15 = vector.broadcast %cst_8 : f32 to vector<16x1xf32>
    %16 = arith.divf %14, %15 : vector<16x1xf32>
    %17 = vector.broadcast %9 : vector<16x1xf32> to vector<16x128xf32>
    %18 = arith.subf %1, %17 : vector<16x128xf32>
    %cst_9 = arith.constant 9.99999974E-6 : f32
    %19 = vector.broadcast %cst_9 : f32 to vector<16x1xf32>
    %20 = arith.addf %16, %19 : vector<16x1xf32>
    %21 = math.rsqrt %20 : vector<16x1xf32>
    %22 = vector.broadcast %21 : vector<16x1xf32> to vector<16x128xf32>
    %23 = arith.mulf %18, %22 : vector<16x128xf32>
    %24 = vector.shape_cast %3 : vector<128xf32> to vector<1x128xf32>
    %25 = vector.broadcast %24 : vector<1x128xf32> to vector<16x128xf32>
    %26 = arith.mulf %23, %25 : vector<16x128xf32>
    %27 = vector.shape_cast %5 : vector<128xf32> to vector<1x128xf32>
    %28 = vector.broadcast %27 : vector<1x128xf32> to vector<16x128xf32>
    %29 = arith.addf %26, %28 : vector<16x128xf32>
    %30 = arith.truncf %29 : vector<16x128xf32> to vector<16x128xbf16>
    %c0_10 = arith.constant 0 : index
    %c0_11 = arith.constant 0 : index
    %31 = vector.load %arg5[%c0_10, %c0_11] : memref<128x256xbf16, #tpu.memory_space<vmem>>, vector<128x256xbf16>
    %cst_12 = arith.constant dense<0.000000e+00> : vector<16x256xf32>
    %32 = tpu.matmul %30, %31, %cst_12 {dimension_numbers = #tpu.dot_dimension_numbers<[1], [0], [0], [1], [0, 0, 1, 1], [], []>} : vector<16x128xbf16>, vector<128x256xbf16>, vector<16x256xf32> -> vector<16x256xf32>
    %c0_13 = arith.constant 0 : index
    %c0_14 = arith.constant 0 : index
    %33 = vector.load %arg6[%c0_13, %c0_14] : memref<1x256xf32, #tpu.memory_space<vmem>>, vector<1x256xf32>
    %34 = vector.shape_cast %33 : vector<1x256xf32> to vector<256xf32>
    %35 = vector.shape_cast %34 : vector<256xf32> to vector<1x256xf32>
    %36 = vector.broadcast %35 : vector<1x256xf32> to vector<16x256xf32>
    %37 = arith.addf %32, %36 : vector<16x256xf32>
    %38 = arith.truncf %37 : vector<16x256xf32> to vector<16x256xbf16>
    %c0_15 = arith.constant 0 : index
    %c0_16 = arith.constant 0 : index
    %c0_17 = arith.constant 0 : index
    %39 = vector.load %arg7[%c0_15, %c0_16, %c0_17] : memref<1x16x256xbf16, #tpu.memory_space<vmem>>, vector<1x16x256xbf16>
    %40 = vector.shape_cast %39 : vector<1x16x256xbf16> to vector<16x256xbf16>
    %41 = vector.shape_cast %38 : vector<16x256xbf16> to vector<1x16x256xbf16>
    tpu.vector_store %arg7[%c0_15, %c0_16, %c0_17], %41 {strides = array<i32>} : memref<1x16x256xbf16, #tpu.memory_space<vmem>>, vector<1x16x256xbf16>,
    return
  }
  func.func @transform_0(%arg0: i32, %arg1: i32) -> (i32, i32, i32) {
    %c0_i32 = arith.constant 0 : i32
    %c0_i32_0 = arith.constant 0 : i32
    return %arg0, %arg1, %c0_i32 : i32, i32, i32
  }
  func.func @transform_1(%arg0: i32, %arg1: i32) -> (i32, i32) {
    %c0_i32 = arith.constant 0 : i32
    %c0_i32_0 = arith.constant 0 : i32
    %c0_i32_1 = arith.constant 0 : i32
    return %c0_i32, %c0_i32_0 : i32, i32
  }
  func.func @transform_2(%arg0: i32, %arg1: i32) -> (i32, i32) {
    %c0_i32 = arith.constant 0 : i32
    %c0_i32_0 = arith.constant 0 : i32
    %c0_i32_1 = arith.constant 0 : i32
    return %c0_i32, %c0_i32_0 : i32, i32
  }
  func.func @transform_3(%arg0: i32, %arg1: i32) -> (i32, i32) {
    %c0_i32 = arith.constant 0 : i32
    %c0_i32_0 = arith.constant 0 : i32
    %c0_i32_1 = arith.constant 0 : i32
    return %c0_i32, %c0_i32_0 : i32, i32
  }
  func.func @transform_4(%arg0: i32, %arg1: i32) -> (i32, i32) {
    %c0_i32 = arith.constant 0 : i32
    %c0_i32_0 = arith.constant 0 : i32
    %c0_i32_1 = arith.constant 0 : i32
    return %c0_i32, %c0_i32_0 : i32, i32
  }
  func.func @transform_5(%arg0: i32, %arg1: i32) -> (i32, i32, i32) {
    %c0_i32 = arith.constant 0 : i32
    %c0_i32_0 = arith.constant 0 : i32
    return %arg0, %arg1, %c0_i32 : i32, i32, i32
  }
}

</mosaic_0001>

<llo_original>
// kernel: tpu_custom_call.1
$region0: #{tpu_custom_call.1}
  #allocation0 [shape = 'u32[]', space=smem, size = 0x4, offset = 0x4, fixed_abs, tag = 'smem constant byte address 0x4 - core index']
  #allocation1 [shape = 'u32[144,128]{1,0:T(1,128)}', space=vmem, size = 0x12000, scoped, tag = 'internal scratch']
  %s0 = inlined_call_operand.hbm [shape: f32[2,16,128], index: 0, kind: input, shape index: {}]
  %s1 = inlined_call_operand.vmem [shape: f32[1,128], index: 1, kind: input, shape index: {}]
  %s2 = inlined_call_operand.hbm [shape: f32[1,128], index: 2, kind: input, shape index: {}]
  %s3 = inlined_call_operand.hbm [shape: bf16[128,256], index: 3, kind: input, shape index: {}]
  %s4 = inlined_call_operand.vmem [shape: f32[1,256], index: 4, kind: input, shape index: {}]
  %s5 = inlined_call_operand.hbm [shape: bf16[2,16,256], index: 5, kind: output, shape index: {}]
  %s6 = sld [smem:[#allocation0]]
  $region65: #{tpu_custom_call.1} parent=0
    _
  %s8 = ssub.s32 1, %s6
  %s9 = scalar_select 0, %s8, %s6
  $region1: #{tpu_custom_call.1} parent=0
    #allocation2 [shape = 'u8[16384]{0}', space=vmem, size = 0x4000, scoped, tag = 'input window, operand 0']
    #allocation3 [shape = 's32[2]{0}', space=sflag, size = 0x8, scoped, tag = 'scoped memory for tpu_custom_call.1']
    #allocation4 [shape = 's32[2]{0}', space=sflag, size = 0x8, scoped, tag = 'scoped memory for tpu_custom_call.1']
    #allocation5 [shape = 'u8[512]{0}', space=vmem, size = 0x400, scoped, tag = 'input window, operand 2, single buffered']
    #allocation6 [shape = 's32[1]{0}', space=sflag, size = 0x4, scoped, tag = 'scoped memory for tpu_custom_call.1']
    #allocation7 [shape = 'u8[65536]{0}', space=vmem, size = 0x10000, scoped, tag = 'input window, operand 3, single buffered']
    #allocation8 [shape = 'u8[16384]{0}', space=vmem, size = 0x4000, scoped, tag = 'output window, operand 0']
    %10 = vsyncpa [#allocation3], 0
    %s11 = scalar_lea.sflag [#allocation3], 1
    %12 = vsyncpa %s11, 0
    %13 = vsyncpa [#allocation6], 0
    %14 = vsyncpa [#allocation4], 0
    %s15 = scalar_lea.sflag [#allocation4], 1
    %16 = vsyncpa %s15, 0
    loop: start=0, step=1, limit=4
    $region2: #{tpu_custom_call.1} parent=1 // loop_pre_header
      _
    $region3: #{tpu_custom_call.1} parent=1 // loop_header
      %s18 = sphi 0, %s22
      %p19 = scmp.ge.s32.totalorder %s18, 4
      %s25 = sphi 0, %s37
      %s26 = sphi 0, %s33
      %s27 = sphi 0, %s25
      %s28 = sphi 0, %s26
      %s29 = sphi 0, %s27
      %s30 = sphi 0, %s28
      %s42 = sphi 0, %s44
      %s45 = sphi 0, %s42
      %s46 = sphi 0, %s45
      %s62 = sphi 0, %s46
      %s66 = sphi 0, %s66
      %s68 = sphi 0, %s66
      %s69 = sphi 0, %s68
      %s83 = sphi 0, %s69
      %s87 = sphi 0, %s87
      %s89 = sphi 0, %s87
      %s90 = sphi 0, %s89
      %s104 = sphi 0, %s90
      %s108 = sphi 0, %s108
      %s110 = sphi 0, %s108
      %s111 = sphi 0, %s110
      %s125 = sphi 0, %s111
      %s129 = sphi 0, %s129
      %s131 = sphi 0, %s129
      %s132 = sphi 0, %s131
      %s146 = sphi 0, %s132
      %s154 = sphi 0, %s156
      %s157 = sphi 0, %s154
      %s158 = sphi 0, %s157
      %s174 = sphi 0, %s158
    $region4: #{tpu_custom_call.1} parent=1 // loop_header_branch
      %21 = sbr.rel (%p19) target = $region8
    $region5: #{tpu_custom_call.1} parent=1 // loop_body
      %s23 = ssub.s32 %s18, 1
      %s24 = ssub.s32 %s18, 2
      %s31 = sadd.s32 1, %s26
      %p32 = scmp.ge.s32.totalorder %s31, 1
      %s33 = scalar_select %p32, 0, %s31
      %s34 = sadd.s32 1, %s25
      %s35 = scalar_select %p32, %s34, %s25
      %p36 = scmp.ge.s32.totalorder %s35, 2
      %s37 = scalar_select %p36, 0, %s35
      %s38 = ssub.s32 %s25, %s37
      %s39 = ssub.s32 %s26, %s33
      %s40 = sor.u32 %s38, %s39
      %p41 = scmp.eq.s32.totalorder %s40, 0
      %s43 = sadd.s32 %s42, 1
      %s44 = scalar_select %p41, %s42, %s43
      %p47 = pneg %p41
      %p48 = scmp.eq.s32.totalorder %s18, 1
      %p49 = por %p47, %p48
      %p50 = scmp.ne.s32.totalorder %s42, %s45
      %p51 = scmp.eq.s32.totalorder %s18, 0
      %p52 = por %p50, %p51
      %p53 = scmp.ne.s32.totalorder %s42, %s45
      %p54 = scmp.eq.s32.totalorder %s23, 1
      %p55 = por %p53, %p54
      %p56 = scmp.ne.s32.totalorder %s45, %s46
      %p57 = scmp.eq.s32.totalorder %s23, 0
      %p58 = por %p56, %p57
      %p59 = scmp.ne.s32.totalorder %s45, %s46
      %p60 = scmp.eq.s32.totalorder %s24, 1
      %p61 = por %p59, %p60
      %p63 = scmp.ne.s32.totalorder %s46, %s62
      %p64 = scmp.eq.s32.totalorder %s24, 0
      %p65 = por %p63, %p64
      %s67 = sadd.s32 %s66, 1
      %p70 = scmp.eq.s32.totalorder %s18, 1
      %p71 = scmp.ne.s32.totalorder %s66, %s68
      %p72 = scmp.eq.s32.totalorder %s18, 0
      %p73 = por %p71, %p72
      %p74 = scmp.ne.s32.totalorder %s66, %s68
      %p75 = scmp.eq.s32.totalorder %s23, 1
      %p76 = por %p74, %p75
      %p77 = scmp.ne.s32.totalorder %s68, %s69
      %p78 = scmp.eq.s32.totalorder %s23, 0
      %p79 = por %p77, %p78
      %p80 = scmp.ne.s32.totalorder %s68, %s69
      %p81 = scmp.eq.s32.totalorder %s24, 1
      %p82 = por %p80, %p81
      %p84 = scmp.ne.s32.totalorder %s69, %s83
      %p85 = scmp.eq.s32.totalorder %s24, 0
      %p86 = por %p84, %p85
      %s88 = sadd.s32 %s87, 1
      %p91 = scmp.eq.s32.totalorder %s18, 1
      %p92 = scmp.ne.s32.totalorder %s87, %s89
      %p93 = scmp.eq.s32.totalorder %s18, 0
      %p94 = por %p92, %p93
      %p95 = scmp.ne.s32.totalorder %s87, %s89
      %p96 = scmp.eq.s32.totalorder %s23, 1
      %p97 = por %p95, %p96
      %p98 = scmp.ne.s32.totalorder %s89, %s90
      %p99 = scmp.eq.s32.totalorder %s23, 0
      %p100 = por %p98, %p99
      %p101 = scmp.ne.s32.totalorder %s89, %s90
      %p102 = scmp.eq.s32.totalorder %s24, 1
      %p103 = por %p101, %p102
      %p105 = scmp.ne.s32.totalorder %s90, %s104
      %p106 = scmp.eq.s32.totalorder %s24, 0
      %p107 = por %p105, %p106
      %s109 = sadd.s32 %s108, 1
      %p112 = scmp.eq.s32.totalorder %s18, 1
      %p113 = scmp.ne.s32.totalorder %s108, %s110
      %p114 = scmp.eq.s32.totalorder %s18, 0
      %p115 = por %p113, %p114
      %p116 = scmp.ne.s32.totalorder %s108, %s110
      %p117 = scmp.eq.s32.totalorder %s23, 1
      %p118 = por %p116, %p117
      %p119 = scmp.ne.s32.totalorder %s110, %s111
      %p120 = scmp.eq.s32.totalorder %s23, 0
      %p121 = por %p119, %p120
      %p122 = scmp.ne.s32.totalorder %s110, %s111
      %p123 = scmp.eq.s32.totalorder %s24, 1
      %p124 = por %p122, %p123
      %p126 = scmp.ne.s32.totalorder %s111, %s125
      %p127 = scmp.eq.s32.totalorder %s24, 0
      %p128 = por %p126, %p127
      %s130 = sadd.s32 %s129, 1
      %p133 = scmp.eq.s32.totalorder %s18, 1
      %p134 = scmp.ne.s32.totalorder %s129, %s131
      %p135 = scmp.eq.s32.totalorder %s18, 0
      %p136 = por %p134, %p135
      %p137 = scmp.ne.s32.totalorder %s129, %s131
      %p138 = scmp.eq.s32.totalorder %s23, 1
      %p139 = por %p137, %p138
      %p140 = scmp.ne.s32.totalorder %s131, %s132
      %p141 = scmp.eq.s32.totalorder %s23, 0
      %p142 = por %p140, %p141
      %p143 = scmp.ne.s32.totalorder %s131, %s132
      %p144 = scmp.eq.s32.totalorder %s24, 1
      %p145 = por %p143, %p144
      %p147 = scmp.ne.s32.totalorder %s132, %s146
      %p148 = scmp.eq.s32.totalorder %s24, 0
      %p149 = por %p147, %p148
      %s150 = ssub.s32 %s25, %s37
      %s151 = ssub.s32 %s26, %s33
      %s152 = sor.u32 %s150, %s151
      %p153 = scmp.eq.s32.totalorder %s152, 0
      %s155 = sadd.s32 %s154, 1
      %s156 = scalar_select %p153, %s154, %s155
      %p159 = pneg %p153
      %p160 = scmp.eq.s32.totalorder %s18, 1
      %p161 = por %p159, %p160
      %p162 = scmp.ne.s32.totalorder %s154, %s157
      %p163 = scmp.eq.s32.totalorder %s18, 0
      %p164 = por %p162, %p163
      %p165 = scmp.ne.s32.totalorder %s154, %s157
      %p166 = scmp.eq.s32.totalorder %s23, 1
      %p167 = por %p165, %p166
      %p168 = scmp.ne.s32.totalorder %s157, %s158
      %p169 = scmp.eq.s32.totalorder %s23, 0
      %p170 = por %p168, %p169
      %p171 = scmp.ne.s32.totalorder %s157, %s158
      %p172 = scmp.eq.s32.totalorder %s24, 1
      %p173 = por %p171, %p172
      %p175 = scmp.ne.s32.totalorder %s158, %s174
      %p176 = scmp.eq.s32.totalorder %s24, 0
      %p177 = por %p175, %p176
      %p178 = scmp.le.s32.totalorder 1, %s18
      %p179 = scmp.lt.s32.totalorder %s18, 3
      %p180 = pnand %p178, %p179
      %p181 = pneg %p180
      // Predicated region
      $region9: #{tpu_custom_call.1} parent=5 // pred_check
        _
      $region10: #{tpu_custom_call.1} parent=5 // pred_check_branch
        %183 = sbr.rel (%p180) target = $region12
      $region11: #{tpu_custom_call.1} parent=5 // pred_region
        %s184 = ssub.s32 %s18, 1
        // Predicated region
        $region13: #{tpu_custom_call.1} parent=11 // pred_check
          %p185 = pneg %p79
        $region14: #{tpu_custom_call.1} parent=11 // pred_check_branch
          %187 = sbr.rel (%p185) target = $region16
        $region15: #{tpu_custom_call.1} parent=11 // pred_region
          _
        $region16: #{tpu_custom_call.1} parent=11 // pred_fallthru
          _
        // Predicated region
        $region17: #{tpu_custom_call.1} parent=11 // pred_check
          %p188 = pneg %p100
        $region18: #{tpu_custom_call.1} parent=11 // pred_check_branch
          %190 = sbr.rel (%p188) target = $region20
        $region19: #{tpu_custom_call.1} parent=11 // pred_region
          %s192 = ssub.s32 16, 16
          %193 = vsyncadd [#allocation6], %s192
          %s195 = sshll.u32 [#allocation5], 4
          %s196 = int_to_ptr.vmem [resolvable:$true] %s195
          %198 = dma.hbm_to_vmem [thread:$0]  %s2, 16, %s196, [#allocation6]
        $region20: #{tpu_custom_call.1} parent=11 // pred_fallthru
          _
        // Predicated region
        $region21: #{tpu_custom_call.1} parent=11 // pred_check
          %p199 = pneg %p121
        $region22: #{tpu_custom_call.1} parent=11 // pred_check_branch
          %201 = sbr.rel (%p199) target = $region24
        $region23: #{tpu_custom_call.1} parent=11 // pred_region
          %s203 = ssub.s32 2048, 2048
          %204 = vsyncadd [#allocation6], %s203
          %s205 = sshll.u32 [#allocation7], 4
          %s206 = int_to_ptr.vmem [resolvable:$true] %s205
          %211 = dma.hbm_to_vmem [thread:$0]  %s3, 2048, %s206, [#allocation6], 128, 128, 8
        $region24: #{tpu_custom_call.1} parent=11 // pred_fallthru
          _
        // Predicated region
        $region25: #{tpu_custom_call.1} parent=11 // pred_check
          %p212 = pneg %p142
        $region26: #{tpu_custom_call.1} parent=11 // pred_check_branch
          %214 = sbr.rel (%p212) target = $region28
        $region27: #{tpu_custom_call.1} parent=11 // pred_region
          _
        $region28: #{tpu_custom_call.1} parent=11 // pred_fallthru
          _
      $region12: #{tpu_custom_call.1} parent=5 // pred_fallthru
        _
      %p215 = scmp.lt.s32.totalorder %s18, 2
      // Predicated region
      $region29: #{tpu_custom_call.1} parent=5 // pred_check
        %p216 = pneg %p215
      $region30: #{tpu_custom_call.1} parent=5 // pred_check_branch
        %218 = sbr.rel (%p216) target = $region32
      $region31: #{tpu_custom_call.1} parent=5 // pred_region
        // Predicated region
        $region33: #{tpu_custom_call.1} parent=31 // pred_check
          %p219 = pneg %p52
        $region34: #{tpu_custom_call.1} parent=31 // pred_check_branch
          %221 = sbr.rel (%p219) target = $region36
        $region35: #{tpu_custom_call.1} parent=31 // pred_region
          %s222 = sand.u32 %s42, 1
          %s223 = scalar_lea.sflag [#allocation3], %s222
          %s224 = sand.u32 %s42, 1
          %s225 = smul.addr %s224, 16
          %s226 = scalar_lea.vmem [#allocation2], %s225
          %s227 = smul.u32 2, %s26
          %s229 = ssub.s32 256, 256
          %230 = vsyncadd %s223, %s229
          %s231 = smul.addr %s25, 2
          %s232 = sadd.s32 %s227, %s231
          %s233 = smul.addr %s232, 128
          %s234 = scalar_lea.hbm %s0, %s233
          %s235 = sshll.u32 %s226, 4
          %s236 = int_to_ptr.vmem [resolvable:$true] %s235
          %241 = dma.hbm_to_vmem [thread:$0]  %s234, 256, %s236, %s223, 128, 128, 8
        $region36: #{tpu_custom_call.1} parent=31 // pred_fallthru
          _
      $region32: #{tpu_custom_call.1} parent=5 // pred_fallthru
        _
      %p242 = scmp.le.s32.totalorder 1, %s18
      %p243 = scmp.lt.s32.totalorder %s18, 3
      %p244 = pnand %p242, %p243
      %p245 = pneg %p244
      // Predicated region
      $region37: #{tpu_custom_call.1} parent=5 // pred_check
        _
      $region38: #{tpu_custom_call.1} parent=5 // pred_check_branch
        %247 = sbr.rel (%p244) target = $region40
      $region39: #{tpu_custom_call.1} parent=5 // pred_region
        %s248 = ssub.s32 %s18, 1
        %s249 = sand.u32 %s45, 1
        %s250 = scalar_lea.sflag [#allocation3], %s249
        %s251 = sand.u32 %s45, 1
        %s252 = smul.addr %s251, 16
        %s253 = scalar_lea.vmem [#allocation2], %s252
        // Predicated region
        $region41: #{tpu_custom_call.1} parent=39 // pred_check
          %p254 = pneg %p58
        $region42: #{tpu_custom_call.1} parent=39 // pred_check_branch
          %256 = sbr.rel (%p254) target = $region44
        $region43: #{tpu_custom_call.1} parent=39 // pred_region
          %257 = dma.done %s250, 256
        $region44: #{tpu_custom_call.1} parent=39 // pred_fallthru
          _
        // Predicated region
        $region45: #{tpu_custom_call.1} parent=39 // pred_check
          %p258 = pneg %p100
        $region46: #{tpu_custom_call.1} parent=39 // pred_check_branch
          %260 = sbr.rel (%p258) target = $region48
        $region47: #{tpu_custom_call.1} parent=39 // pred_region
          %261 = dma.done [#allocation6], 16
        $region48: #{tpu_custom_call.1} parent=39 // pred_fallthru
          _
        // Predicated region
        $region49: #{tpu_custom_call.1} parent=39 // pred_check
          %p262 = pneg %p121
        $region50: #{tpu_custom_call.1} parent=39 // pred_check_branch
          %264 = sbr.rel (%p262) target = $region52
        $region51: #{tpu_custom_call.1} parent=39 // pred_region
          %265 = dma.done [#allocation6], 2048
        $region52: #{tpu_custom_call.1} parent=39 // pred_fallthru
          _
        %s266 = sand.u32 %s45, 1
        %s267 = scalar_lea.sflag [#allocation3], %s266
        %s268 = sand.u32 %s45, 1
        %s269 = smul.addr %s268, 16
        %s270 = scalar_lea.vmem [#allocation2], %s269
        %p271 = pneg %p58
        %p272 = pneg %p55
        %p273 = pneg %p79
        %p274 = pneg %p76
        %p275 = pneg %p100
        %p276 = pneg %p97
        %p277 = pneg %p121
        %p278 = pneg %p118
        %p279 = pneg %p142
        %p280 = pneg %p139
        %p281 = pneg %p170
        %p282 = pneg %p167
        %s283 = sand.u32 %s157, 1
        %s284 = scalar_lea.sflag [#allocation4], %s283
        %s285 = sand.u32 %s157, 1
        %s286 = smul.addr %s285, 16
        %s287 = scalar_lea.vmem [#allocation8], %s286
        %s288 = smul.u32 2, %s28
        %s289 = smul.u32 2, %s28
        %v291 = vld [vmem:[%s253] sm:$0xff]
        %v292 = vld [vmem:[%s253 + $0x8] sm:$0xff]
        %v293 = vld [vmem:[%s1] sm:$0x1]
        %v294 = vld [vmem:[#allocation5] sm:$0x1]
        %295 = vadd.xlane.f32.xlu0 %v291
        %v296 = vpop.xlane.xlu0 %295
        %297 = vadd.xlane.f32.xlu0 %v292
        %v298 = vpop.xlane.xlu0 %297
        %v299 = vrcp.pop 128.0
        %v300 = vmul.f32 %v296, %v299
        %v301 = vmul.f32 %v298, %v299
        %v302 = vsub.f32 %v291, %v300
        %v303 = vsub.f32 %v292, %v301
        %v304 = vmul.f32 %v302, %v302
        %v305 = vmul.f32 %v303, %v303
        %306 = vadd.xlane.f32.xlu0 %v304
        %v307 = vpop.xlane.xlu0 %306
        %308 = vadd.xlane.f32.xlu0 %v305
        %v309 = vpop.xlane.xlu0 %308
        %v310 = vmul.f32 %v307, %v299
        %v311 = vmul.f32 %v309, %v299
        %v312 = vadd.f32 %v310, 1e-05
        %v313 = vadd.f32 %v311, 1e-05
        %v314 = vrsqrt.pop %v312
        %v315 = vrsqrt.pop %v313
        %v316 = vmul.f32 %v302, %v314
        %v317 = vmul.f32 %v303, %v315
        %v319 = vlaneseq
        %v320 = vshrl.u32 %v319, 7
        %v321 = vsub.s32 0, %v320
        %v322 = vrot.slane %v293, %v321
        %v324 = vmul.f32 %v316, %v322
        %v325 = vmul.f32 %v317, %v322
        %v327 = vlaneseq
        %v328 = vshrl.u32 %v327, 7
        %v329 = vsub.s32 0, %v328
        %v330 = vrot.slane %v294, %v329
        %v332 = vadd.f32 %v324, %v330
        %v333 = vadd.f32 %v325, %v330
        %v334 = vpack.c.bf16 %v333, %v332
        %v335 = vld [vmem:[#allocation7] sm:$0xff]
        %v336 = vld [vmem:[#allocation7 + $0x8] sm:$0xff]
        %v337 = vld [vmem:[#allocation7 + $0x10] sm:$0xff]
        %v338 = vld [vmem:[#allocation7 + $0x18] sm:$0xff]
        %v339 = vld [vmem:[#allocation7 + $0x20] sm:$0xff]
        %v340 = vld [vmem:[#allocation7 + $0x28] sm:$0xff]
        %v341 = vld [vmem:[#allocation7 + $0x30] sm:$0xff]
        %v342 = vld [vmem:[#allocation7 + $0x38] sm:$0xff]
        %v343 = vld [vmem:[#allocation7 + $0x40] sm:$0xff]
        %v344 = vld [vmem:[#allocation7 + $0x48] sm:$0xff]
        %v345 = vld [vmem:[#allocation7 + $0x50] sm:$0xff]
        %v346 = vld [vmem:[#allocation7 + $0x58] sm:$0xff]
        %v347 = vld [vmem:[#allocation7 + $0x60] sm:$0xff]
        %v348 = vld [vmem:[#allocation7 + $0x68] sm:$0xff]
        %v349 = vld [vmem:[#allocation7 + $0x70] sm:$0xff]
        %v350 = vld [vmem:[#allocation7 + $0x78] sm:$0xff]
        %v351 = vld [vmem:[%s4] sm:$0x3]
        %v353 = vlaneseq
        %v354 = vshrl.u32 %v353, 7
        %v355 = vsub.s32 0, %v354
        %v356 = vrot.slane %v351, %v355
        %v357 = vlaneseq
        %v358 = vshrl.u32 %v357, 7
        %v359 = vsub.s32 1, %v358
        %v360 = vrot.slane %v351, %v359
        %v379 = vunpack.c.l.b16 %v335
        %v380 = vunpack.c.h.b16 %v335
        %v381 = vunpack.c.l.b16 %v336
        %v382 = vunpack.c.h.b16 %v336
        %v383 = vunpack.c.l.b16 %v337
        %v384 = vunpack.c.h.b16 %v337
        %v385 = vunpack.c.l.b16 %v338
        %v386 = vunpack.c.h.b16 %v338
        %v387 = vunpack.c.l.b16 %v339
        %v388 = vunpack.c.h.b16 %v339
        %v389 = vunpack.c.l.b16 %v340
        %v390 = vunpack.c.h.b16 %v340
        %v391 = vunpack.c.l.b16 %v341
        %v392 = vunpack.c.h.b16 %v341
        %v393 = vunpack.c.l.b16 %v342
        %v394 = vunpack.c.h.b16 %v342
        %v395 = vunpack.c.l.b16 %v343
        %v396 = vunpack.c.h.b16 %v343
        %v397 = vunpack.c.l.b16 %v344
        %v398 = vunpack.c.h.b16 %v344
        %v399 = vunpack.c.l.b16 %v345
        %v400 = vunpack.c.h.b16 %v345
        %v401 = vunpack.c.l.b16 %v346
        %v402 = vunpack.c.h.b16 %v346
        %v403 = vunpack.c.l.b16 %v347
        %v404 = vunpack.c.h.b16 %v347
        %v405 = vunpack.c.l.b16 %v348
        %v406 = vunpack.c.h.b16 %v348
        %v407 = vunpack.c.l.b16 %v349
        %v408 = vunpack.c.h.b16 %v349
        %v409 = vunpack.c.l.b16 %v350
        %v410 = vunpack.c.h.b16 %v350
        %v411 = vpack.c.b16 %v381, %v379
        %v412 = vpack.c.b16 %v382, %v380
        %v413 = vpack.c.b16 %v385, %v383
        %v414 = vpack.c.b16 %v386, %v384
        %v415 = vpack.c.b16 %v389, %v387
        %v416 = vpack.c.b16 %v390, %v388
        %v417 = vpack.c.b16 %v393, %v391
        %v418 = vpack.c.b16 %v394, %v392
        %v419 = vpack.c.b16 %v397, %v395
        %v420 = vpack.c.b16 %v398, %v396
        %v421 = vpack.c.b16 %v401, %v399
        %v422 = vpack.c.b16 %v402, %v400
        %v423 = vpack.c.b16 %v405, %v403
        %v424 = vpack.c.b16 %v406, %v404
        %v425 = vpack.c.b16 %v409, %v407
        %v426 = vpack.c.b16 %v410, %v408
        %443 = vmatprep.subr.bf16.mxu0 %v426
        %444 = vmatpush1.bf16.msra.mxu0 %v425
        %445 = vmatprep.subr.bf16.mxu0 %v424
        %446 = vmatpush1.bf16.msra.mxu0 %v423
        %447 = vmatprep.subr.bf16.mxu0 %v422
        %448 = vmatpush1.bf16.msra.mxu0 %v421
        %449 = vmatprep.subr.bf16.mxu0 %v420
        %450 = vmatpush1.bf16.msra.mxu0 %v419
        %451 = vmatprep.subr.bf16.mxu0 %v418
        %452 = vmatpush1.bf16.msra.mxu0 %v417
        %453 = vmatprep.subr.bf16.mxu0 %v416
        %454 = vmatpush1.bf16.msra.mxu0 %v415
        %455 = vmatprep.subr.bf16.mxu0 %v414
        %456 = vmatpush1.bf16.msra.mxu0 %v413
        %457 = vmatprep.subr.bf16.mxu0 %v412
        %458 = vmatpush1.bf16.msra.mxu0 %v411
        %459 = vmatprep.subr.bf16.mxu0 0
        %460 = vmatpush2.bf16.msra.mxu0 0
        %461 = vmatprep.subr.bf16.mxu0 0
        %462 = vmatpush2.bf16.msra.mxu0 0
        %463 = vmatprep.subr.bf16.mxu0 0
        %464 = vmatpush2.bf16.msra.mxu0 0
        %465 = vmatprep.subr.bf16.mxu0 0
        %466 = vmatpush2.bf16.msra.mxu0 0
        %467 = vmatprep.subr.bf16.mxu0 0
        %468 = vmatpush2.bf16.msra.mxu0 0
        %469 = vmatprep.subr.bf16.mxu0 0
        %470 = vmatpush2.bf16.msra.mxu0 0
        %471 = vmatprep.subr.bf16.mxu0 0
        %472 = vmatpush2.bf16.msra.mxu0 0
        %473 = vmatprep.subr.bf16.mxu0 0
        %474 = vmatpush2.bf16.msra.mxu0 0
        %475 = vmatprep.mubr.bf16.mxu0 0
        %476 = vmatmul.mubr.bf16.gmra.mxu0 %v334
        %v477 = vpop.f32.mrf.mxu0
        %v478 = vadd.f32 %v356, %v477
        %v479 = vpop.f32.mrf.mxu0
        %v480 = vadd.f32 %v360, %v479
        %v481 = vpop.f32.mrf.mxu0
        %v482 = vadd.f32 %v356, %v481
        %v483 = vpop.f32.mrf.mxu0
        %v484 = vadd.f32 %v360, %v483
        %485 = vdwg.mxu0
        %v486 = vpack.c.bf16 %v482, %v478
        %v487 = vpack.c.bf16 %v484, %v480
        %v490 = vunpack.c.l.b16 %v486
        %v491 = vunpack.c.l.b16 %v487
        %v492 = vunpack.c.h.b16 %v486
        %v493 = vunpack.c.h.b16 %v487
        %v494 = vpack.c.b16 %v491, %v490
        %v495 = vpack.c.b16 %v493, %v492
        %498 = vst [vmem:[%s287] sm:$0xff] %v494
        %499 = vst [vmem:[%s287 + $0x8] sm:$0xff] %v495
        %s500 = sand.u32 %s157, 1
        %s501 = scalar_lea.sflag [#allocation4], %s500
        %s502 = sand.u32 %s157, 1
        %s503 = smul.addr %s502, 16
        %s504 = scalar_lea.vmem [#allocation8], %s503
        // Predicated region
        $region53: #{tpu_custom_call.1} parent=39 // pred_check
          %p505 = pneg %p167
        $region54: #{tpu_custom_call.1} parent=39 // pred_check_branch
          %507 = sbr.rel (%p505) target = $region56
        $region55: #{tpu_custom_call.1} parent=39 // pred_region
          %s508 = smul.u32 2, %s28
          %s510 = ssub.s32 256, 256
          %511 = vsyncadd %s501, %s510
          %s512 = smul.addr %s508, 2
          %s513 = smul.addr %s27, 4
          %s514 = sadd.s32 %s512, %s513
          %s515 = smul.addr %s514, 64
          %s516 = scalar_lea.hbm %s5, %s515
          %s517 = sshll.u32 %s504, 4
          %s518 = int_to_ptr.vmem [resolvable:$true] %s517
          %523 = dma.vmem_to_hbm [thread:$0]  %s518, 256, %s516, %s501, 128, 128, 8
        $region56: #{tpu_custom_call.1} parent=39 // pred_fallthru
          _
      $region40: #{tpu_custom_call.1} parent=5 // pred_fallthru
        _
      %p524 = scmp.le.s32.totalorder 2, %s18
      // Predicated region
      $region57: #{tpu_custom_call.1} parent=5 // pred_check
        %p525 = pneg %p524
      $region58: #{tpu_custom_call.1} parent=5 // pred_check_branch
        %527 = sbr.rel (%p525) target = $region60
      $region59: #{tpu_custom_call.1} parent=5 // pred_region
        %s528 = ssub.s32 %s18, 2
        // Predicated region
        $region61: #{tpu_custom_call.1} parent=59 // pred_check
          %p529 = pneg %p173
        $region62: #{tpu_custom_call.1} parent=59 // pred_check_branch
          %531 = sbr.rel (%p529) target = $region64
        $region63: #{tpu_custom_call.1} parent=59 // pred_region
          %s532 = sand.u32 %s158, 1
          %s533 = scalar_lea.sflag [#allocation4], %s532
          %s534 = sand.u32 %s158, 1
          %s535 = smul.addr %s534, 16
          %s536 = scalar_lea.vmem [#allocation8], %s535
          %537 = dma.done %s533, 256
        $region64: #{tpu_custom_call.1} parent=59 // pred_fallthru
          _
      $region60: #{tpu_custom_call.1} parent=5 // pred_fallthru
        _
    $region6: #{tpu_custom_call.1} parent=1 // loop_footer
      %s22 = sadd.s32 1, %s18
    $region7: #{tpu_custom_call.1} parent=1 // loop_footer_branch
      %17 = sbr.rel target = $region3
    $region8: #{tpu_custom_call.1} parent=1 // loop_exit
      _
    %538 = vsyncpa [#allocation3], 1
    %s539 = scalar_lea.sflag [#allocation3], 1
    %540 = vsyncpa %s539, 1
    %541 = vsyncpa [#allocation6], 1
    %542 = vsyncpa [#allocation4], 1
    %s543 = scalar_lea.sflag [#allocation4], 1
    %544 = vsyncpa %s543, 1

</llo_original>
